<compile_context>
chip_gen: v7x
topology: tpu7x:2x2x1
jax: 0.10.0
libtpu: 0.0.40
codegen_flags: <defaults>
</compile_context>

<pallas_src>
import functools

import jax
import jax.numpy as jnp
from jax.experimental import pallas as pl
from jax.experimental.pallas import tpu as pltpu


def mlp_kernel(x_ref, w_in_ref, b_in_ref, w1_ref, b1_ref, w2_ref, b2_ref,
               w_out_ref, b_out_ref, o_ref, *, hidden_layers):
    # Hoist shared-weight / bias loads out of the unrolled loop (review item 1).
    w1 = w1_ref[...]
    b1 = b1_ref[...]
    w2 = w2_ref[...]
    b2 = b2_ref[...]

    # input_layer:  h^T = W_in @ x^T + b_in      (no activation, matches PyTorch)
    # shapes: (H, in) @ (in, TB) -> (H, TB); bias (H, 1) broadcasts along lanes.
    h = jnp.dot(w_in_ref[...], x_ref[...],
                preferred_element_type=jnp.float32) + b_in_ref[...]

    # hidden_layer (shared weights) applied `hidden_layers` times:
    #   h = W2 @ relu(W1 @ h + b1) + b2
    for _ in range(hidden_layers):
        a = jnp.dot(w1, h, preferred_element_type=jnp.float32) + b1
        a = jnp.maximum(a, 0.0)
        h = jnp.dot(w2, a, preferred_element_type=jnp.float32) + b2

    # output_layer: y^T = W_out @ h + b_out      -> (out, TB), lane-dense in batch
    o_ref[...] = jnp.dot(w_out_ref[...], h,
                         preferred_element_type=jnp.float32) + b_out_ref[...]


def _pick_batch_tile(batch):
    # For realistic batches, stream batch tiles (multiple of 128 so the lane
    # dim of the BlockSpec stays legal); tiny batches run gridless-equivalent
    # with a single full-size block (per-step overhead would dominate).
    for cand in (1024, 512, 256, 128):
        if batch > cand and batch % cand == 0:
            return cand
    return batch


def ai_model_forward(x, params, hidden_layers):
    """x: (batch, input_features) f32.  Weights in PyTorch (out, in) layout,
    biases as (out, 1)."""
    batch, in_features = x.shape
    hidden_features = params["w1"].shape[0]
    out_features = params["w_out"].shape[0]

    # Feature-major: lane dim carries batch.
    x_t = x.T  # (in_features, batch)

    tb = _pick_batch_tile(batch)
    grid = (batch // tb,)

    kernel = functools.partial(mlp_kernel, hidden_layers=hidden_layers)

    # Activations tiled over batch; weights/biases fully resident across steps.
    def act_spec(rows):
        return pl.BlockSpec((rows, tb), lambda i: (0, i))

    def resident(shape):
        return pl.BlockSpec(shape, lambda i: (0, 0))

    flops = 2 * batch * (in_features * hidden_features
                         + 2 * hidden_layers * hidden_features * hidden_features
                         + hidden_features * out_features)
    bytes_accessed = 4 * (x.size
                          + sum(p.size for p in params.values())
                          + batch * out_features)

    out_t = pl.pallas_call(
        kernel,
        out_shape=jax.ShapeDtypeStruct((out_features, batch), jnp.float32),
        grid_spec=pltpu.PrefetchScalarGridSpec(
            num_scalar_prefetch=0,
            grid=grid,
            in_specs=[
                act_spec(in_features),                                   # x^T
                resident((hidden_features, in_features)),                # W_in
                resident((hidden_features, 1)),                          # b_in
                resident((hidden_features, hidden_features)),            # W1
                resident((hidden_features, 1)),                          # b1
                resident((hidden_features, hidden_features)),            # W2
                resident((hidden_features, 1)),                          # b2
                resident((out_features, hidden_features)),               # W_out
                resident((out_features, 1)),                             # b_out
            ],
            out_specs=act_spec(out_features),
        ),
        compiler_params=pltpu.CompilerParams(
            dimension_semantics=("parallel",),
        ),
        cost_estimate=pl.CostEstimate(
            flops=flops, transcendentals=0, bytes_accessed=bytes_accessed),
    )(x_t,
      params["w_in"], params["b_in"],
      params["w1"], params["b1"],
      params["w2"], params["b2"],
      params["w_out"], params["b_out"])

    # Back to (batch, out_features) — cheap layout plumbing outside the kernel.
    return out_t.T


def init_params(key, input_features, hidden_features, output_features):
    """PyTorch nn.Linear-style init; weights (out, in), biases (out, 1)."""
    ks = jax.random.split(key, 8)

    def lin(kw, kb, fan_in, fan_out):
        bound = 1.0 / jnp.sqrt(fan_in)
        w = jax.random.uniform(kw, (fan_out, fan_in), jnp.float32, -bound, bound)
        b = jax.random.uniform(kb, (fan_out, 1), jnp.float32, -bound, bound)
        return w, b

    w_in, b_in = lin(ks[0], ks[1], input_features, hidden_features)
    w1, b1 = lin(ks[2], ks[3], hidden_features, hidden_features)
    w2, b2 = lin(ks[4], ks[5], hidden_features, hidden_features)
    w_out, b_out = lin(ks[6], ks[7], hidden_features, output_features)
    return dict(w_in=w_in, b_in=b_in, w1=w1, b1=b1, w2=w2, b2=b2,
                w_out=w_out, b_out=b_out)


def reference_forward(x, p, hidden_layers):
    h = x @ p["w_in"].T + p["b_in"].T
    for _ in range(hidden_layers):
        a = jnp.maximum(h @ p["w1"].T + p["b1"].T, 0.0)
        h = a @ p["w2"].T + p["b2"].T
    return h @ p["w_out"].T + p["b_out"].T


if __name__ == "__main__":
    input_features = 16
    hidden_features = 32
    output_features = 8
    hidden_layers = 3
    batch = 8

    key = jax.random.PRNGKey(0)
    k_x, k_p = jax.random.split(key)
    x = jax.random.normal(k_x, (batch, input_features), jnp.float32)
    params = init_params(k_p, input_features, hidden_features, output_features)

    out = ai_model_forward(x, params, hidden_layers)
    out = jax.block_until_ready(out)

    ref = reference_forward(x, params, hidden_layers)
    assert out.shape == (batch, output_features)
    assert jnp.allclose(out, ref, atol=1e-4, rtol=1e-4)

    print("KERNEL_OK")
</pallas_src>

<mosaic_0001>
module attributes {stable_mosaic.version = 11 : i64} {
  func.func @mlp_kernel(%arg0: i32, %arg1: memref<16x8xf32, #tpu.memory_space<vmem>>, %arg2: memref<32x16xf32, #tpu.memory_space<vmem>>, %arg3: memref<32x1xf32, #tpu.memory_space<vmem>>, %arg4: memref<32x32xf32, #tpu.memory_space<vmem>>, %arg5: memref<32x1xf32, #tpu.memory_space<vmem>>, %arg6: memref<32x32xf32, #tpu.memory_space<vmem>>, %arg7: memref<32x1xf32, #tpu.memory_space<vmem>>, %arg8: memref<8x32xf32, #tpu.memory_space<vmem>>, %arg9: memref<8x1xf32, #tpu.memory_space<vmem>>, %arg10: memref<8x8xf32, #tpu.memory_space<vmem>>) attributes {dimension_semantics = [#tpu.dimension_semantics<parallel>], iteration_bounds = array<i64: 1>, scalar_prefetch = 0 : i64, scratch_operands = 0 : i64, tpu.core_type = #tpu.core_type<tc>, window_params = [{transform_indices = @transform_0, window_bounds = array<i64: 16, 8>}, {pipeline_mode = #tpu.pipeline_mode<synchronous>, transform_indices = @transform_1, window_bounds = array<i64: 32, 16>}, {pipeline_mode = #tpu.pipeline_mode<synchronous>, transform_indices = @transform_2, window_bounds = array<i64: 32, 1>}, {pipeline_mode = #tpu.pipeline_mode<synchronous>, transform_indices = @transform_3, window_bounds = array<i64: 32, 32>}, {pipeline_mode = #tpu.pipeline_mode<synchronous>, transform_indices = @transform_4, window_bounds = array<i64: 32, 1>}, {pipeline_mode = #tpu.pipeline_mode<synchronous>, transform_indices = @transform_5, window_bounds = array<i64: 32, 32>}, {pipeline_mode = #tpu.pipeline_mode<synchronous>, transform_indices = @transform_6, window_bounds = array<i64: 32, 1>}, {pipeline_mode = #tpu.pipeline_mode<synchronous>, transform_indices = @transform_7, window_bounds = array<i64: 8, 32>}, {pipeline_mode = #tpu.pipeline_mode<synchronous>, transform_indices = @transform_8, window_bounds = array<i64: 8, 1>}, {transform_indices = @transform_9, window_bounds = array<i64: 8, 8>}]} {
    %c0 = arith.constant 0 : index
    %c0_0 = arith.constant 0 : index
    %0 = vector.load %arg4[%c0, %c0_0] : memref<32x32xf32, #tpu.memory_space<vmem>>, vector<32x32xf32>
    %c0_1 = arith.constant 0 : index
    %c0_2 = arith.constant 0 : index
    %1 = vector.load %arg5[%c0_1, %c0_2] : memref<32x1xf32, #tpu.memory_space<vmem>>, vector<32x1xf32>
    %c0_3 = arith.constant 0 : index
    %c0_4 = arith.constant 0 : index
    %2 = vector.load %arg6[%c0_3, %c0_4] : memref<32x32xf32, #tpu.memory_space<vmem>>, vector<32x32xf32>
    %c0_5 = arith.constant 0 : index
    %c0_6 = arith.constant 0 : index
    %3 = vector.load %arg7[%c0_5, %c0_6] : memref<32x1xf32, #tpu.memory_space<vmem>>, vector<32x1xf32>
    %c0_7 = arith.constant 0 : index
    %c0_8 = arith.constant 0 : index
    %4 = vector.load %arg2[%c0_7, %c0_8] : memref<32x16xf32, #tpu.memory_space<vmem>>, vector<32x16xf32>
    %c0_9 = arith.constant 0 : index
    %c0_10 = arith.constant 0 : index
    %5 = vector.load %arg1[%c0_9, %c0_10] : memref<16x8xf32, #tpu.memory_space<vmem>>, vector<16x8xf32>
    %cst = arith.constant dense<0.000000e+00> : vector<32x8xf32>
    %6 = tpu.matmul %4, %5, %cst {dimension_numbers = #tpu.dot_dimension_numbers<[1], [0], [0], [1], [0, 0, 1, 1], [], []>} : vector<32x16xf32>, vector<16x8xf32>, vector<32x8xf32> -> vector<32x8xf32>
    %c0_11 = arith.constant 0 : index
    %c0_12 = arith.constant 0 : index
    %7 = vector.load %arg3[%c0_11, %c0_12] : memref<32x1xf32, #tpu.memory_space<vmem>>, vector<32x1xf32>
    %8 = vector.broadcast %7 : vector<32x1xf32> to vector<32x8xf32>
    %9 = arith.addf %6, %8 : vector<32x8xf32>
    %cst_13 = arith.constant dense<0.000000e+00> : vector<32x8xf32>
    %10 = tpu.matmul %0, %9, %cst_13 {dimension_numbers = #tpu.dot_dimension_numbers<[1], [0], [0], [1], [0, 0, 1, 1], [], []>} : vector<32x32xf32>, vector<32x8xf32>, vector<32x8xf32> -> vector<32x8xf32>
    %11 = vector.broadcast %1 : vector<32x1xf32> to vector<32x8xf32>
    %12 = arith.addf %10, %11 : vector<32x8xf32>
    %cst_14 = arith.constant 0.000000e+00 : f32
    %13 = vector.broadcast %cst_14 : f32 to vector<32x8xf32>
    %14 = arith.maximumf %12, %13 : vector<32x8xf32>
    %cst_15 = arith.constant dense<0.000000e+00> : vector<32x8xf32>
    %15 = tpu.matmul %2, %14, %cst_15 {dimension_numbers = #tpu.dot_dimension_numbers<[1], [0], [0], [1], [0, 0, 1, 1], [], []>} : vector<32x32xf32>, vector<32x8xf32>, vector<32x8xf32> -> vector<32x8xf32>
    %16 = vector.broadcast %3 : vector<32x1xf32> to vector<32x8xf32>
    %17 = arith.addf %15, %16 : vector<32x8xf32>
    %cst_16 = arith.constant dense<0.000000e+00> : vector<32x8xf32>
    %18 = tpu.matmul %0, %17, %cst_16 {dimension_numbers = #tpu.dot_dimension_numbers<[1], [0], [0], [1], [0, 0, 1, 1], [], []>} : vector<32x32xf32>, vector<32x8xf32>, vector<32x8xf32> -> vector<32x8xf32>
    %19 = vector.broadcast %1 : vector<32x1xf32> to vector<32x8xf32>
    %20 = arith.addf %18, %19 : vector<32x8xf32>
    %cst_17 = arith.constant 0.000000e+00 : f32
    %21 = vector.broadcast %cst_17 : f32 to vector<32x8xf32>
    %22 = arith.maximumf %20, %21 : vector<32x8xf32>
    %cst_18 = arith.constant dense<0.000000e+00> : vector<32x8xf32>
    %23 = tpu.matmul %2, %22, %cst_18 {dimension_numbers = #tpu.dot_dimension_numbers<[1], [0], [0], [1], [0, 0, 1, 1], [], []>} : vector<32x32xf32>, vector<32x8xf32>, vector<32x8xf32> -> vector<32x8xf32>
    %24 = vector.broadcast %3 : vector<32x1xf32> to vector<32x8xf32>
    %25 = arith.addf %23, %24 : vector<32x8xf32>
    %cst_19 = arith.constant dense<0.000000e+00> : vector<32x8xf32>
    %26 = tpu.matmul %0, %25, %cst_19 {dimension_numbers = #tpu.dot_dimension_numbers<[1], [0], [0], [1], [0, 0, 1, 1], [], []>} : vector<32x32xf32>, vector<32x8xf32>, vector<32x8xf32> -> vector<32x8xf32>
    %27 = vector.broadcast %1 : vector<32x1xf32> to vector<32x8xf32>
    %28 = arith.addf %26, %27 : vector<32x8xf32>
    %cst_20 = arith.constant 0.000000e+00 : f32
    %29 = vector.broadcast %cst_20 : f32 to vector<32x8xf32>
    %30 = arith.maximumf %28, %29 : vector<32x8xf32>
    %cst_21 = arith.constant dense<0.000000e+00> : vector<32x8xf32>
    %31 = tpu.matmul %2, %30, %cst_21 {dimension_numbers = #tpu.dot_dimension_numbers<[1], [0], [0], [1], [0, 0, 1, 1], [], []>} : vector<32x32xf32>, vector<32x8xf32>, vector<32x8xf32> -> vector<32x8xf32>
    %32 = vector.broadcast %3 : vector<32x1xf32> to vector<32x8xf32>
    %33 = arith.addf %31, %32 : vector<32x8xf32>
    %c0_22 = arith.constant 0 : index
    %c0_23 = arith.constant 0 : index
    %34 = vector.load %arg8[%c0_22, %c0_23] : memref<8x32xf32, #tpu.memory_space<vmem>>, vector<8x32xf32>
    %cst_24 = arith.constant dense<0.000000e+00> : vector<8x8xf32>
    %35 = tpu.matmul %34, %33, %cst_24 {dimension_numbers = #tpu.dot_dimension_numbers<[1], [0], [0], [1], [0, 0, 1, 1], [], []>} : vector<8x32xf32>, vector<32x8xf32>, vector<8x8xf32> -> vector<8x8xf32>
    %c0_25 = arith.constant 0 : index
    %c0_26 = arith.constant 0 : index
    %36 = vector.load %arg9[%c0_25, %c0_26] : memref<8x1xf32, #tpu.memory_space<vmem>>, vector<8x1xf32>
    %37 = vector.broadcast %36 : vector<8x1xf32> to vector<8x8xf32>
    %38 = arith.addf %35, %37 : vector<8x8xf32>
    %c0_27 = arith.constant 0 : index
    %c0_28 = arith.constant 0 : index
    %39 = vector.load %arg10[%c0_27, %c0_28] : memref<8x8xf32, #tpu.memory_space<vmem>>, vector<8x8xf32>
    tpu.vector_store %arg10[%c0_27, %c0_28], %38 {strides = array<i32>} : memref<8x8xf32, #tpu.memory_space<vmem>>, vector<8x8xf32>,
    return
  }
  func.func @transform_0(%arg0: i32) -> (i32, i32) {
    %c0_i32 = arith.constant 0 : i32
    %c0_i32_0 = arith.constant 0 : i32
    return %c0_i32, %arg0 : i32, i32
  }
  func.func @transform_1(%arg0: i32) -> (i32, i32) {
    %c0_i32 = arith.constant 0 : i32
    %c0_i32_0 = arith.constant 0 : i32
    %c0_i32_1 = arith.constant 0 : i32
    return %c0_i32, %c0_i32_0 : i32, i32
  }
  func.func @transform_2(%arg0: i32) -> (i32, i32) {
    %c0_i32 = arith.constant 0 : i32
    %c0_i32_0 = arith.constant 0 : i32
    %c0_i32_1 = arith.constant 0 : i32
    return %c0_i32, %c0_i32_0 : i32, i32
  }
  func.func @transform_3(%arg0: i32) -> (i32, i32) {
    %c0_i32 = arith.constant 0 : i32
    %c0_i32_0 = arith.constant 0 : i32
    %c0_i32_1 = arith.constant 0 : i32
    return %c0_i32, %c0_i32_0 : i32, i32
  }
  func.func @transform_4(%arg0: i32) -> (i32, i32) {
    %c0_i32 = arith.constant 0 : i32
    %c0_i32_0 = arith.constant 0 : i32
    %c0_i32_1 = arith.constant 0 : i32
    return %c0_i32, %c0_i32_0 : i32, i32
  }
  func.func @transform_5(%arg0: i32) -> (i32, i32) {
    %c0_i32 = arith.constant 0 : i32
    %c0_i32_0 = arith.constant 0 : i32
    %c0_i32_1 = arith.constant 0 : i32
    return %c0_i32, %c0_i32_0 : i32, i32
  }
  func.func @transform_6(%arg0: i32) -> (i32, i32) {
    %c0_i32 = arith.constant 0 : i32
    %c0_i32_0 = arith.constant 0 : i32
    %c0_i32_1 = arith.constant 0 : i32
    return %c0_i32, %c0_i32_0 : i32, i32
  }
  func.func @transform_7(%arg0: i32) -> (i32, i32) {
    %c0_i32 = arith.constant 0 : i32
    %c0_i32_0 = arith.constant 0 : i32
    %c0_i32_1 = arith.constant 0 : i32
    return %c0_i32, %c0_i32_0 : i32, i32
  }
  func.func @transform_8(%arg0: i32) -> (i32, i32) {
    %c0_i32 = arith.constant 0 : i32
    %c0_i32_0 = arith.constant 0 : i32
    %c0_i32_1 = arith.constant 0 : i32
    return %c0_i32, %c0_i32_0 : i32, i32
  }
  func.func @transform_9(%arg0: i32) -> (i32, i32) {
    %c0_i32 = arith.constant 0 : i32
    %c0_i32_0 = arith.constant 0 : i32
    return %c0_i32, %arg0 : i32, i32
  }
}

</mosaic_0001>

<llo_original>
// kernel: tpu_custom_call.1
$region0: #{tpu_custom_call.1}
  #allocation0 [shape = 'u32[]', space=smem, size = 0x4, offset = 0x4, fixed_abs, tag = 'smem constant byte address 0x4 - core index']
  #allocation1 [shape = 'u32[144,128]{1,0:T(1,128)}', space=vmem, size = 0x12000, scoped, tag = 'internal scratch']
  %s0 = inlined_call_operand.vmem [shape: f32[16,8], index: 0, kind: input, shape index: {}]
  %s1 = inlined_call_operand.vmem [shape: f32[32,16], index: 1, kind: input, shape index: {}]
  %s2 = inlined_call_operand.vmem [shape: f32[32,1], index: 2, kind: input, shape index: {}]
  %s3 = inlined_call_operand.vmem [shape: f32[32,32], index: 3, kind: input, shape index: {}]
  %s4 = inlined_call_operand.vmem [shape: f32[32,1], index: 4, kind: input, shape index: {}]
  %s5 = inlined_call_operand.vmem [shape: f32[32,32], index: 5, kind: input, shape index: {}]
  %s6 = inlined_call_operand.vmem [shape: f32[32,1], index: 6, kind: input, shape index: {}]
  %s7 = inlined_call_operand.vmem [shape: f32[8,32], index: 7, kind: input, shape index: {}]
  %s8 = inlined_call_operand.vmem [shape: f32[8,1], index: 8, kind: input, shape index: {}]
  %s9 = inlined_call_operand.hbm [shape: f32[8,8], index: 9, kind: output, shape index: {}]
  %s10 = sld [smem:[#allocation0]]
  $region46: #{tpu_custom_call.1} parent=0
    _
  %s12 = ssub.s32 1, %s10
  %s13 = scalar_select 0, %s12, %s10
  $region1: #{tpu_custom_call.1} parent=0
    #allocation2 [shape = 'u8[4096]{0}', space=vmem, size = 0x1000, scoped, tag = 'output window, operand 0, single buffered']
    #allocation3 [shape = 's32[1]{0}', space=sflag, size = 0x4, scoped, tag = 'scoped memory for tpu_custom_call.1']
    %14 = vsyncpa [#allocation3], 0
    // Predicated region
    $region2: #{tpu_custom_call.1} parent=1 // pred_check
      _
    $region3: #{tpu_custom_call.1} parent=1 // pred_check_branch
      %16 = sbr.rel (0) target = $region5
    $region4: #{tpu_custom_call.1} parent=1 // pred_region
      _
    $region5: #{tpu_custom_call.1} parent=1 // pred_fallthru
      _
    // Predicated region
    $region6: #{tpu_custom_call.1} parent=1 // pred_check
      _
    $region7: #{tpu_custom_call.1} parent=1 // pred_check_branch
      %18 = sbr.rel (0) target = $region9
    $region8: #{tpu_custom_call.1} parent=1 // pred_region
      _
    $region9: #{tpu_custom_call.1} parent=1 // pred_fallthru
      _
    // Predicated region
    $region10: #{tpu_custom_call.1} parent=1 // pred_check
      _
    $region11: #{tpu_custom_call.1} parent=1 // pred_check_branch
      %20 = sbr.rel (0) target = $region13
    $region12: #{tpu_custom_call.1} parent=1 // pred_region
      _
    $region13: #{tpu_custom_call.1} parent=1 // pred_fallthru
      _
    // Predicated region
    $region14: #{tpu_custom_call.1} parent=1 // pred_check
      _
    $region15: #{tpu_custom_call.1} parent=1 // pred_check_branch
      %22 = sbr.rel (0) target = $region17
    $region16: #{tpu_custom_call.1} parent=1 // pred_region
      _
    $region17: #{tpu_custom_call.1} parent=1 // pred_fallthru
      _
    // Predicated region
    $region18: #{tpu_custom_call.1} parent=1 // pred_check
      _
    $region19: #{tpu_custom_call.1} parent=1 // pred_check_branch
      %24 = sbr.rel (0) target = $region21
    $region20: #{tpu_custom_call.1} parent=1 // pred_region
      _
    $region21: #{tpu_custom_call.1} parent=1 // pred_fallthru
      _
    // Predicated region
    $region22: #{tpu_custom_call.1} parent=1 // pred_check
      _
    $region23: #{tpu_custom_call.1} parent=1 // pred_check_branch
      %26 = sbr.rel (0) target = $region25
    $region24: #{tpu_custom_call.1} parent=1 // pred_region
      _
    $region25: #{tpu_custom_call.1} parent=1 // pred_fallthru
      _
    // Predicated region
    $region26: #{tpu_custom_call.1} parent=1 // pred_check
      _
    $region27: #{tpu_custom_call.1} parent=1 // pred_check_branch
      %28 = sbr.rel (0) target = $region29
    $region28: #{tpu_custom_call.1} parent=1 // pred_region
      _
    $region29: #{tpu_custom_call.1} parent=1 // pred_fallthru
      _
    // Predicated region
    $region30: #{tpu_custom_call.1} parent=1 // pred_check
      _
    $region31: #{tpu_custom_call.1} parent=1 // pred_check_branch
      %30 = sbr.rel (0) target = $region33
    $region32: #{tpu_custom_call.1} parent=1 // pred_region
      _
    $region33: #{tpu_custom_call.1} parent=1 // pred_fallthru
      _
    // Predicated region
    $region34: #{tpu_custom_call.1} parent=1 // pred_check
      _
    $region35: #{tpu_custom_call.1} parent=1 // pred_check_branch
      %32 = sbr.rel (0) target = $region37
    $region36: #{tpu_custom_call.1} parent=1 // pred_region
      _
    $region37: #{tpu_custom_call.1} parent=1 // pred_fallthru
      _
    %v33 = vld [vmem:[%s3] sm:$0xff]
    %v34 = vld [vmem:[%s3 + $0x8] sm:$0xff]
    %v35 = vld [vmem:[%s3 + $0x10] sm:$0xff]
    %v36 = vld [vmem:[%s3 + $0x18] sm:$0xff]
    %v37 = vld [vmem:[%s4] sm:$0xff]
    %v38 = vld [vmem:[%s4 + $0x8] sm:$0xff]
    %v39 = vld [vmem:[%s4 + $0x10] sm:$0xff]
    %v40 = vld [vmem:[%s4 + $0x18] sm:$0xff]
    %v41 = vld [vmem:[%s5] sm:$0xff]
    %v42 = vld [vmem:[%s5 + $0x8] sm:$0xff]
    %v43 = vld [vmem:[%s5 + $0x10] sm:$0xff]
    %v44 = vld [vmem:[%s5 + $0x18] sm:$0xff]
    %v45 = vld [vmem:[%s6] sm:$0xff]
    %v46 = vld [vmem:[%s6 + $0x8] sm:$0xff]
    %v47 = vld [vmem:[%s6 + $0x10] sm:$0xff]
    %v48 = vld [vmem:[%s6 + $0x18] sm:$0xff]
    %v49 = vld [vmem:[%s1] sm:$0xff]
    %v50 = vld [vmem:[%s1 + $0x8] sm:$0xff]
    %v51 = vld [vmem:[%s1 + $0x10] sm:$0xff]
    %v52 = vld [vmem:[%s1 + $0x18] sm:$0xff]
    %v53 = vld [vmem:[%s0] sm:$0xff]
    %v54 = vld [vmem:[%s0 + $0x8] sm:$0xff]
    %v55 = vld [vmem:[%s2] sm:$0xff]
    %v56 = vld [vmem:[%s2 + $0x8] sm:$0xff]
    %v57 = vld [vmem:[%s2 + $0x10] sm:$0xff]
    %v58 = vld [vmem:[%s2 + $0x18] sm:$0xff]
    %60 = vset.pattern.permute.xlu0 0
    %61 = vperm.xlu0 %60, %v55
    %v62 = vpop.permute.xlu0 %61
    %65 = vset.pattern.permute.xlu0 0
    %66 = vperm.xlu0 %65, %v56
    %v67 = vpop.permute.xlu0 %66
    %70 = vset.pattern.permute.xlu0 0
    %71 = vperm.xlu0 %70, %v57
    %v72 = vpop.permute.xlu0 %71
    %75 = vset.pattern.permute.xlu0 0
    %76 = vperm.xlu0 %75, %v58
    %v77 = vpop.permute.xlu0 %76
    %vm79 = vcmask 130048
    %v81 = vsel %vm79, %v49, 0
    %v84 = vsel %vm79, %v50, 0
    %v87 = vsel %vm79, %v51, 0
    %v90 = vsel %vm79, %v52, 0
    %92 = vmatprep.subr.mxu0 0.0
    %93 = vmatpush1.msra.mxu0 %v53
    %94 = vmatprep.subr.mxu0 0.0
    %95 = vmatpush1.msra.mxu0 %v54
    %96 = vmatprep.subr.mxu0 0.0
    %97 = vmatpush1.msra.mxu0 0.0
    %98 = vmatprep.subr.mxu0 0.0
    %99 = vmatpush1.msra.mxu0 0.0
    %100 = vmatprep.subr.mxu0 0.0
    %101 = vmatpush1.msra.mxu0 0.0
    %102 = vmatprep.subr.mxu0 0.0
    %103 = vmatpush1.msra.mxu0 0.0
    %104 = vmatprep.subr.mxu0 0.0
    %105 = vmatpush1.msra.mxu0 0.0
    %106 = vmatprep.subr.mxu0 0.0
    %107 = vmatpush1.msra.mxu0 0.0
    %108 = vmatprep.subr.mxu0 0.0
    %109 = vmatpush1.msra.mxu0 0.0
    %110 = vmatprep.subr.mxu0 0.0
    %111 = vmatpush1.msra.mxu0 0.0
    %112 = vmatprep.subr.mxu0 0.0
    %113 = vmatpush1.msra.mxu0 0.0
    %114 = vmatprep.subr.mxu0 0.0
    %115 = vmatpush1.msra.mxu0 0.0
    %116 = vmatprep.subr.mxu0 0.0
    %117 = vmatpush1.msra.mxu0 0.0
    %118 = vmatprep.subr.mxu0 0.0
    %119 = vmatpush1.msra.mxu0 0.0
    %120 = vmatprep.subr.mxu0 0.0
    %121 = vmatpush1.msra.mxu0 0.0
    %122 = vmatprep.subr.mxu0 0.0
    %123 = vmatpush1.msra.mxu0 0.0
    %124 = vmatprep.subr.mxu0 0.0
    %125 = vmatpush1.msra.mxu0 0.0
    %126 = vmatprep.subr.mxu0 0.0
    %127 = vmatpush1.msra.mxu0 0.0
    %128 = vmatprep.subr.mxu0 0.0
    %129 = vmatpush1.msra.mxu0 0.0
    %130 = vmatprep.subr.mxu0 0.0
    %131 = vmatpush1.msra.mxu0 0.0
    %132 = vmatprep.subr.mxu0 0.0
    %133 = vmatpush1.msra.mxu0 0.0
    %134 = vmatprep.subr.mxu0 0.0
    %135 = vmatpush1.msra.mxu0 0.0
    %136 = vmatprep.subr.mxu0 0.0
    %137 = vmatpush1.msra.mxu0 0.0
    %138 = vmatprep.subr.mxu0 0.0
    %139 = vmatpush1.msra.mxu0 0.0
    %140 = vmatprep.subr.mxu0 0.0
    %141 = vmatpush1.msra.mxu0 0.0
    %142 = vmatprep.subr.mxu0 0.0
    %143 = vmatpush1.msra.mxu0 0.0
    %144 = vmatprep.subr.mxu0 0.0
    %145 = vmatpush1.msra.mxu0 0.0
    %146 = vmatprep.subr.mxu0 0.0
    %147 = vmatpush1.msra.mxu0 0.0
    %148 = vmatprep.subr.mxu0 0.0
    %149 = vmatpush1.msra.mxu0 0.0
    %150 = vmatprep.subr.mxu0 0.0
    %151 = vmatpush1.msra.mxu0 0.0
    %152 = vmatprep.subr.mxu0 0.0
    %153 = vmatpush1.msra.mxu0 0.0
    %154 = vmatprep.subr.mxu0 0.0
    %155 = vmatpush1.msra.mxu0 0.0
    %156 = vmatprep.mubr.f32.mxu0 0.0
    %157 = vmatmul.mubr.f32.gmra.mrb[0].mxu0 %v81
    %v158 = vpop.f32.mrb[0].mxu0
    %v159 = vadd.f32 %v62, %v158
    %v160 = vpop.f32.mrb[0].mxu0
    %161 = vmatprep.mubr.f32.mxu0 0.0
    %162 = vmatmul.mubr.f32.gmra.mrb[0].mxu0 %v84
    %v163 = vpop.f32.mrb[0].mxu0
    %v164 = vadd.f32 %v67, %v163
    %v165 = vpop.f32.mrb[0].mxu0
    %166 = vmatprep.mubr.f32.mxu0 0.0
    %167 = vmatmul.mubr.f32.gmra.mrb[0].mxu0 %v87
    %v168 = vpop.f32.mrb[0].mxu0
    %v169 = vadd.f32 %v72, %v168
    %v170 = vpop.f32.mrb[0].mxu0
    %171 = vmatprep.mubr.f32.mxu0 0.0
    %172 = vmatmul.mubr.f32.gmra.mrb[0].mxu0 %v90
    %v173 = vpop.f32.mrb[0].mxu0
    %v174 = vadd.f32 %v77, %v173
    %v175 = vpop.f32.mrb[0].mxu0
    %176 = vdwg.mxu0
    %178 = vset.pattern.permute.xlu0 0
    %179 = vperm.xlu0 %178, %v37
    %v180 = vpop.permute.xlu0 %179
    %183 = vset.pattern.permute.xlu0 0
    %184 = vperm.xlu0 %183, %v38
    %v185 = vpop.permute.xlu0 %184
    %188 = vset.pattern.permute.xlu0 0
    %189 = vperm.xlu0 %188, %v39
    %v190 = vpop.permute.xlu0 %189
    %193 = vset.pattern.permute.xlu0 0
    %194 = vperm.xlu0 %193, %v40
    %v195 = vpop.permute.xlu0 %194
    %vm197 = vcmask 261120
    %v199 = vsel %vm197, %v33, 0
    %v202 = vsel %vm197, %v34, 0
    %v205 = vsel %vm197, %v35, 0
    %v208 = vsel %vm197, %v36, 0
    %210 = vmatprep.subr.mxu0 0.0
    %211 = vmatpush1.msra.mxu0 %v159
    %212 = vmatprep.subr.mxu0 0.0
    %213 = vmatpush1.msra.mxu0 %v164
    %214 = vmatprep.subr.mxu0 0.0
    %215 = vmatpush1.msra.mxu0 %v169
    %216 = vmatprep.subr.mxu0 0.0
    %217 = vmatpush1.msra.mxu0 %v174
    %218 = vmatprep.subr.mxu0 0.0
    %219 = vmatpush1.msra.mxu0 0.0
    %220 = vmatprep.subr.mxu0 0.0
    %221 = vmatpush1.msra.mxu0 0.0
    %222 = vmatprep.subr.mxu0 0.0
    %223 = vmatpush1.msra.mxu0 0.0
    %224 = vmatprep.subr.mxu0 0.0
    %225 = vmatpush1.msra.mxu0 0.0
    %226 = vmatprep.subr.mxu0 0.0
    %227 = vmatpush1.msra.mxu0 0.0
    %228 = vmatprep.subr.mxu0 0.0
    %229 = vmatpush1.msra.mxu0 0.0
    %230 = vmatprep.subr.mxu0 0.0
    %231 = vmatpush1.msra.mxu0 0.0
    %232 = vmatprep.subr.mxu0 0.0
    %233 = vmatpush1.msra.mxu0 0.0
    %234 = vmatprep.subr.mxu0 0.0
    %235 = vmatpush1.msra.mxu0 0.0
    %236 = vmatprep.subr.mxu0 0.0
    %237 = vmatpush1.msra.mxu0 0.0
    %238 = vmatprep.subr.mxu0 0.0
    %239 = vmatpush1.msra.mxu0 0.0
    %240 = vmatprep.subr.mxu0 0.0
    %241 = vmatpush1.msra.mxu0 0.0
    %242 = vmatprep.subr.mxu0 0.0
    %243 = vmatpush1.msra.mxu0 0.0
    %244 = vmatprep.subr.mxu0 0.0
    %245 = vmatpush1.msra.mxu0 0.0
    %246 = vmatprep.subr.mxu0 0.0
    %247 = vmatpush1.msra.mxu0 0.0
    %248 = vmatprep.subr.mxu0 0.0
    %249 = vmatpush1.msra.mxu0 0.0
    %250 = vmatprep.subr.mxu0 0.0
    %251 = vmatpush1.msra.mxu0 0.0
    %252 = vmatprep.subr.mxu0 0.0
    %253 = vmatpush1.msra.mxu0 0.0
    %254 = vmatprep.subr.mxu0 0.0
    %255 = vmatpush1.msra.mxu0 0.0
    %256 = vmatprep.subr.mxu0 0.0
    %257 = vmatpush1.msra.mxu0 0.0
    %258 = vmatprep.subr.mxu0 0.0
    %259 = vmatpush1.msra.mxu0 0.0
    %260 = vmatprep.subr.mxu0 0.0
    %261 = vmatpush1.msra.mxu0 0.0
    %262 = vmatprep.subr.mxu0 0.0
    %263 = vmatpush1.msra.mxu0 0.0
    %264 = vmatprep.subr.mxu0 0.0
    %265 = vmatpush1.msra.mxu0 0.0
    %266 = vmatprep.subr.mxu0 0.0
    %267 = vmatpush1.msra.mxu0 0.0
    %268 = vmatprep.subr.mxu0 0.0
    %269 = vmatpush1.msra.mxu0 0.0
    %270 = vmatprep.subr.mxu0 0.0
    %271 = vmatpush1.msra.mxu0 0.0
    %272 = vmatprep.subr.mxu0 0.0
    %273 = vmatpush1.msra.mxu0 0.0
    %274 = vmatprep.mubr.f32.mxu0 0.0
    %275 = vmatmul.mubr.f32.gmra.mrb[0].mxu0 %v199
    %v276 = vpop.f32.mrb[0].mxu0
    %v277 = vadd.f32 %v180, %v276
    %v278 = vpop.f32.mrb[0].mxu0
    %279 = vmatprep.mubr.f32.mxu0 0.0
    %280 = vmatmul.mubr.f32.gmra.mrb[0].mxu0 %v202
    %v281 = vpop.f32.mrb[0].mxu0
    %v282 = vadd.f32 %v185, %v281
    %v283 = vpop.f32.mrb[0].mxu0
    %284 = vmatprep.mubr.f32.mxu0 0.0
    %285 = vmatmul.mubr.f32.gmra.mrb[0].mxu0 %v205
    %v286 = vpop.f32.mrb[0].mxu0
    %v287 = vadd.f32 %v190, %v286
    %v288 = vpop.f32.mrb[0].mxu0
    %289 = vmatprep.mubr.f32.mxu0 0.0
    %290 = vmatmul.mubr.f32.gmra.mrb[0].mxu0 %v208
    %v291 = vpop.f32.mrb[0].mxu0
    %v292 = vadd.f32 %v195, %v291
    %v293 = vpop.f32.mrb[0].mxu0
    %294 = vdwg.mxu0
    %v295 = vmax.f32 %v277, 0.0
    %v296 = vmax.f32 %v282, 0.0
    %v297 = vmax.f32 %v287, 0.0
    %v298 = vmax.f32 %v292, 0.0
    %300 = vset.pattern.permute.xlu0 0
    %301 = vperm.xlu0 %300, %v45
    %v302 = vpop.permute.xlu0 %301
    %305 = vset.pattern.permute.xlu0 0
    %306 = vperm.xlu0 %305, %v46
    %v307 = vpop.permute.xlu0 %306
    %310 = vset.pattern.permute.xlu0 0
    %311 = vperm.xlu0 %310, %v47
    %v312 = vpop.permute.xlu0 %311
    %315 = vset.pattern.permute.xlu0 0
    %316 = vperm.xlu0 %315, %v48
    %v317 = vpop.permute.xlu0 %316
    %v320 = vsel %vm197, %v41, 0
    %v323 = vsel %vm197, %v42, 0
    %v326 = vsel %vm197, %v43, 0
    %v329 = vsel %vm197, %v44, 0
    %331 = vmatprep.subr.mxu0 0.0
    %332 = vmatpush1.msra.mxu0 %v295
    %333 = vmatprep.subr.mxu0 0.0
    %334 = vmatpush1.msra.mxu0 %v296
    %335 = vmatprep.subr.mxu0 0.0
    %336 = vmatpush1.msra.mxu0 %v297
    %337 = vmatprep.subr.mxu0 0.0
    %338 = vmatpush1.msra.mxu0 %v298
    %339 = vmatprep.subr.mxu0 0.0
    %340 = vmatpush1.msra.mxu0 0.0
    %341 = vmatprep.subr.mxu0 0.0
    %342 = vmatpush1.msra.mxu0 0.0
    %343 = vmatprep.subr.mxu0 0.0
    %344 = vmatpush1.msra.mxu0 0.0
    %345 = vmatprep.subr.mxu0 0.0
    %346 = vmatpush1.msra.mxu0 0.0
    %347 = vmatprep.subr.mxu0 0.0
    %348 = vmatpush1.msra.mxu0 0.0
    %349 = vmatprep.subr.mxu0 0.0
    %350 = vmatpush1.msra.mxu0 0.0
    %351 = vmatprep.subr.mxu0 0.0
    %352 = vmatpush1.msra.mxu0 0.0
    %353 = vmatprep.subr.mxu0 0.0
    %354 = vmatpush1.msra.mxu0 0.0
    %355 = vmatprep.subr.mxu0 0.0
    %356 = vmatpush1.msra.mxu0 0.0
    %357 = vmatprep.subr.mxu0 0.0
    %358 = vmatpush1.msra.mxu0 0.0
    %359 = vmatprep.subr.mxu0 0.0
    %360 = vmatpush1.msra.mxu0 0.0
    %361 = vmatprep.subr.mxu0 0.0
    %362 = vmatpush1.msra.mxu0 0.0
    %363 = vmatprep.subr.mxu0 0.0
    %364 = vmatpush1.msra.mxu0 0.0
    %365 = vmatprep.subr.mxu0 0.0
    %366 = vmatpush1.msra.mxu0 0.0
    %367 = vmatprep.subr.mxu0 0.0
    %368 = vmatpush1.msra.mxu0 0.0
    %369 = vmatprep.subr.mxu0 0.0
    %370 = vmatpush1.msra.mxu0 0.0
    %371 = vmatprep.subr.mxu0 0.0
    %372 = vmatpush1.msra.mxu0 0.0
    %373 = vmatprep.subr.mxu0 0.0
    %374 = vmatpush1.msra.mxu0 0.0
    %375 = vmatprep.subr.mxu0 0.0
    %376 = vmatpush1.msra.mxu0 0.0
    %377 = vmatprep.subr.mxu0 0.0
    %378 = vmatpush1.msra.mxu0 0.0
    %379 = vmatprep.subr.mxu0 0.0
    %380 = vmatpush1.msra.mxu0 0.0
    %381 = vmatprep.subr.mxu0 0.0
    %382 = vmatpush1.msra.mxu0 0.0
    %383 = vmatprep.subr.mxu0 0.0
    %384 = vmatpush1.msra.mxu0 0.0
    %385 = vmatprep.subr.mxu0 0.0
    %386 = vmatpush1.msra.mxu0 0.0
    %387 = vmatprep.subr.mxu0 0.0
    %388 = vmatpush1.msra.mxu0 0.0
    %389 = vmatprep.subr.mxu0 0.0
    %390 = vmatpush1.msra.mxu0 0.0
    %391 = vmatprep.subr.mxu0 0.0
    %392 = vmatpush1.msra.mxu0 0.0
    %393 = vmatprep.subr.mxu0 0.0
    %394 = vmatpush1.msra.mxu0 0.0
    %395 = vmatprep.mubr.f32.mxu0 0.0
    %396 = vmatmul.mubr.f32.gmra.mrb[0].mxu0 %v320
    %v397 = vpop.f32.mrb[0].mxu0
    %v398 = vadd.f32 %v302, %v397
    %v399 = vpop.f32.mrb[0].mxu0
    %400 = vmatprep.mubr.f32.mxu0 0.0
    %401 = vmatmul.mubr.f32.gmra.mrb[0].mxu0 %v323
    %v402 = vpop.f32.mrb[0].mxu0
    %v403 = vadd.f32 %v307, %v402
    %v404 = vpop.f32.mrb[0].mxu0
    %405 = vmatprep.mubr.f32.mxu0 0.0
    %406 = vmatmul.mubr.f32.gmra.mrb[0].mxu0 %v326
    %v407 = vpop.f32.mrb[0].mxu0
    %v408 = vadd.f32 %v312, %v407
    %v409 = vpop.f32.mrb[0].mxu0
    %410 = vmatprep.mubr.f32.mxu0 0.0
    %411 = vmatmul.mubr.f32.gmra.mrb[0].mxu0 %v329
    %v412 = vpop.f32.mrb[0].mxu0
    %v413 = vadd.f32 %v317, %v412
    %v414 = vpop.f32.mrb[0].mxu0
    %415 = vdwg.mxu0
    %416 = vmatprep.subr.mxu0 0.0
    %417 = vmatpush1.msra.mxu0 %v398
    %418 = vmatprep.subr.mxu0 0.0
    %419 = vmatpush1.msra.mxu0 %v403
    %420 = vmatprep.subr.mxu0 0.0
    %421 = vmatpush1.msra.mxu0 %v408
    %422 = vmatprep.subr.mxu0 0.0
    %423 = vmatpush1.msra.mxu0 %v413
    %424 = vmatprep.subr.mxu0 0.0
    %425 = vmatpush1.msra.mxu0 0.0
    %426 = vmatprep.subr.mxu0 0.0
    %427 = vmatpush1.msra.mxu0 0.0
    %428 = vmatprep.subr.mxu0 0.0
    %429 = vmatpush1.msra.mxu0 0.0
    %430 = vmatprep.subr.mxu0 0.0
    %431 = vmatpush1.msra.mxu0 0.0
    %432 = vmatprep.subr.mxu0 0.0
    %433 = vmatpush1.msra.mxu0 0.0
    %434 = vmatprep.subr.mxu0 0.0
    %435 = vmatpush1.msra.mxu0 0.0
    %436 = vmatprep.subr.mxu0 0.0
    %437 = vmatpush1.msra.mxu0 0.0
    %438 = vmatprep.subr.mxu0 0.0
    %439 = vmatpush1.msra.mxu0 0.0
    %440 = vmatprep.subr.mxu0 0.0
    %441 = vmatpush1.msra.mxu0 0.0
    %442 = vmatprep.subr.mxu0 0.0
    %443 = vmatpush1.msra.mxu0 0.0
    %444 = vmatprep.subr.mxu0 0.0
    %445 = vmatpush1.msra.mxu0 0.0
    %446 = vmatprep.subr.mxu0 0.0
    %447 = vmatpush1.msra.mxu0 0.0
    %448 = vmatprep.subr.mxu0 0.0
    %449 = vmatpush1.msra.mxu0 0.0
    %450 = vmatprep.subr.mxu0 0.0
    %451 = vmatpush1.msra.mxu0 0.0
    %452 = vmatprep.subr.mxu0 0.0
    %453 = vmatpush1.msra.mxu0 0.0
    %454 = vmatprep.subr.mxu0 0.0
    %455 = vmatpush1.msra.mxu0 0.0
    %456 = vmatprep.subr.mxu0 0.0
    %457 = vmatpush1.msra.mxu0 0.0
    %458 = vmatprep.subr.mxu0 0.0
    %459 = vmatpush1.msra.mxu0 0.0
    %460 = vmatprep.subr.mxu0 0.0
    %461 = vmatpush1.msra.mxu0 0.0
    %462 = vmatprep.subr.mxu0 0.0
    %463 = vmatpush1.msra.mxu0 0.0
    %464 = vmatprep.subr.mxu0 0.0
    %465 = vmatpush1.msra.mxu0 0.0
    %466 = vmatprep.subr.mxu0 0.0
    %467 = vmatpush1.msra.mxu0 0.0
    %468 = vmatprep.subr.mxu0 0.0
    %469 = vmatpush1.msra.mxu0 0.0
    %470 = vmatprep.subr.mxu0 0.0
    %471 = vmatpush1.msra.mxu0 0.0
    %472 = vmatprep.subr.mxu0 0.0
    %473 = vmatpush1.msra.mxu0 0.0
    %474 = vmatprep.subr.mxu0 0.0
    %475 = vmatpush1.msra.mxu0 0.0
    %476 = vmatprep.subr.mxu0 0.0
    %477 = vmatpush1.msra.mxu0 0.0
    %478 = vmatprep.subr.mxu0 0.0
    %479 = vmatpush1.msra.mxu0 0.0
    %480 = vmatprep.mubr.f32.mxu0 0.0
    %481 = vmatmul.mubr.f32.gmra.mrb[0].mxu0 %v199
    %v482 = vpop.f32.mrb[0].mxu0
    %v483 = vadd.f32 %v180, %v482
    %v484 = vpop.f32.mrb[0].mxu0
    %485 = vmatprep.mubr.f32.mxu0 0.0
    %486 = vmatmul.mubr.f32.gmra.mrb[0].mxu0 %v202
    %v487 = vpop.f32.mrb[0].mxu0
    %v488 = vadd.f32 %v185, %v487
    %v489 = vpop.f32.mrb[0].mxu0
    %490 = vmatprep.mubr.f32.mxu0 0.0
    %491 = vmatmul.mubr.f32.gmra.mrb[0].mxu0 %v205
    %v492 = vpop.f32.mrb[0].mxu0
    %v493 = vadd.f32 %v190, %v492
    %v494 = vpop.f32.mrb[0].mxu0
    %495 = vmatprep.mubr.f32.mxu0 0.0
    %496 = vmatmul.mubr.f32.gmra.mrb[0].mxu0 %v208
    %v497 = vpop.f32.mrb[0].mxu0
    %v498 = vadd.f32 %v195, %v497
    %v499 = vpop.f32.mrb[0].mxu0
    %500 = vdwg.mxu0
    %v501 = vmax.f32 %v483, 0.0
    %v502 = vmax.f32 %v488, 0.0
    %v503 = vmax.f32 %v493, 0.0
    %v504 = vmax.f32 %v498, 0.0
    %505 = vmatprep.subr.mxu0 0.0
    %506 = vmatpush1.msra.mxu0 %v501
    %507 = vmatprep.subr.mxu0 0.0
    %508 = vmatpush1.msra.mxu0 %v502
    %509 = vmatprep.subr.mxu0 0.0
    %510 = vmatpush1.msra.mxu0 %v503
    %511 = vmatprep.subr.mxu0 0.0
    %512 = vmatpush1.msra.mxu0 %v504
    %513 = vmatprep.subr.mxu0 0.0
    %514 = vmatpush1.msra.mxu0 0.0
    %515 = vmatprep.subr.mxu0 0.0
    %516 = vmatpush1.msra.mxu0 0.0
    %517 = vmatprep.subr.mxu0 0.0
    %518 = vmatpush1.msra.mxu0 0.0
    %519 = vmatprep.subr.mxu0 0.0
    %520 = vmatpush1.msra.mxu0 0.0
    %521 = vmatprep.subr.mxu0 0.0
    %522 = vmatpush1.msra.mxu0 0.0
    %523 = vmatprep.subr.mxu0 0.0
    %524 = vmatpush1.msra.mxu0 0.0
    %525 = vmatprep.subr.mxu0 0.0
    %526 = vmatpush1.msra.mxu0 0.0
    %527 = vmatprep.subr.mxu0 0.0
    %528 = vmatpush1.msra.mxu0 0.0
    %529 = vmatprep.subr.mxu0 0.0
    %530 = vmatpush1.msra.mxu0 0.0
    %531 = vmatprep.subr.mxu0 0.0
    %532 = vmatpush1.msra.mxu0 0.0
    %533 = vmatprep.subr.mxu0 0.0
    %534 = vmatpush1.msra.mxu0 0.0
    %535 = vmatprep.subr.mxu0 0.0
    %536 = vmatpush1.msra.mxu0 0.0
    %537 = vmatprep.subr.mxu0 0.0
    %538 = vmatpush1.msra.mxu0 0.0
    %539 = vmatprep.subr.mxu0 0.0
    %540 = vmatpush1.msra.mxu0 0.0
    %541 = vmatprep.subr.mxu0 0.0
    %542 = vmatpush1.msra.mxu0 0.0
    %543 = vmatprep.subr.mxu0 0.0
    %544 = vmatpush1.msra.mxu0 0.0
    %545 = vmatprep.subr.mxu0 0.0
    %546 = vmatpush1.msra.mxu0 0.0
    %547 = vmatprep.subr.mxu0 0.0
    %548 = vmatpush1.msra.mxu0 0.0
    %549 = vmatprep.subr.mxu0 0.0
    %550 = vmatpush1.msra.mxu0 0.0
    %551 = vmatprep.subr.mxu0 0.0
    %552 = vmatpush1.msra.mxu0 0.0
    %553 = vmatprep.subr.mxu0 0.0
    %554 = vmatpush1.msra.mxu0 0.0
    %555 = vmatprep.subr.mxu0 0.0
    %556 = vmatpush1.msra.mxu0 0.0
    %557 = vmatprep.subr.mxu0 0.0
    %558 = vmatpush1.msra.mxu0 0.0
    %559 = vmatprep.subr.mxu0 0.0
    %560 = vmatpush1.msra.mxu0 0.0
    %561 = vmatprep.subr.mxu0 0.0
    %562 = vmatpush1.msra.mxu0 0.0
    %563 = vmatprep.subr.mxu0 0.0
    %564 = vmatpush1.msra.mxu0 0.0
    %565 = vmatprep.subr.mxu0 0.0
    %566 = vmatpush1.msra.mxu0 0.0
    %567 = vmatprep.subr.mxu0 0.0
    %568 = vmatpush1.msra.mxu0 0.0
    %569 = vmatprep.mubr.f32.mxu0 0.0
    %570 = vmatmul.mubr.f32.gmra.mrb[0].mxu0 %v320
    %v571 = vpop.f32.mrb[0].mxu0
    %v572 = vadd.f32 %v302, %v571
    %v573 = vpop.f32.mrb[0].mxu0
    %574 = vmatprep.mubr.f32.mxu0 0.0
    %575 = vmatmul.mubr.f32.gmra.mrb[0].mxu0 %v323
    %v576 = vpop.f32.mrb[0].mxu0
    %v577 = vadd.f32 %v307, %v576
    %v578 = vpop.f32.mrb[0].mxu0
    %579 = vmatprep.mubr.f32.mxu0 0.0
    %580 = vmatmul.mubr.f32.gmra.mrb[0].mxu0 %v326
    %v581 = vpop.f32.mrb[0].mxu0
    %v582 = vadd.f32 %v312, %v581
    %v583 = vpop.f32.mrb[0].mxu0
    %584 = vmatprep.mubr.f32.mxu0 0.0
    %585 = vmatmul.mubr.f32.gmra.mrb[0].mxu0 %v329
    %v586 = vpop.f32.mrb[0].mxu0
    %v587 = vadd.f32 %v317, %v586
    %v588 = vpop.f32.mrb[0].mxu0
    %589 = vdwg.mxu0
    %590 = vmatprep.subr.mxu0 0.0
    %591 = vmatpush1.msra.mxu0 %v572
    %592 = vmatprep.subr.mxu0 0.0
    %593 = vmatpush1.msra.mxu0 %v577
    %594 = vmatprep.subr.mxu0 0.0
    %595 = vmatpush1.msra.mxu0 %v582
    %596 = vmatprep.subr.mxu0 0.0
    %597 = vmatpush1.msra.mxu0 %v587
    %598 = vmatprep.subr.mxu0 0.0
    %599 = vmatpush1.msra.mxu0 0.0
    %600 = vmatprep.subr.mxu0 0.0
    %601 = vmatpush1.msra.mxu0 0.0
    %602 = vmatprep.subr.mxu0 0.0
    %603 = vmatpush1.msra.mxu0 0.0
    %604 = vmatprep.subr.mxu0 0.0
    %605 = vmatpush1.msra.mxu0 0.0
    %606 = vmatprep.subr.mxu0 0.0
    %607 = vmatpush1.msra.mxu0 0.0
    %608 = vmatprep.subr.mxu0 0.0
    %609 = vmatpush1.msra.mxu0 0.0
    %610 = vmatprep.subr.mxu0 0.0
    %611 = vmatpush1.msra.mxu0 0.0
    %612 = vmatprep.subr.mxu0 0.0
    %613 = vmatpush1.msra.mxu0 0.0
    %614 = vmatprep.subr.mxu0 0.0
    %615 = vmatpush1.msra.mxu0 0.0
    %616 = vmatprep.subr.mxu0 0.0
    %617 = vmatpush1.msra.mxu0 0.0
    %618 = vmatprep.subr.mxu0 0.0
    %619 = vmatpush1.msra.mxu0 0.0
    %620 = vmatprep.subr.mxu0 0.0
    %621 = vmatpush1.msra.mxu0 0.0
    %622 = vmatprep.subr.mxu0 0.0
    %623 = vmatpush1.msra.mxu0 0.0
    %624 = vmatprep.subr.mxu0 0.0
    %625 = vmatpush1.msra.mxu0 0.0
    %626 = vmatprep.subr.mxu0 0.0
    %627 = vmatpush1.msra.mxu0 0.0
    %628 = vmatprep.subr.mxu0 0.0
    %629 = vmatpush1.msra.mxu0 0.0
    %630 = vmatprep.subr.mxu0 0.0
    %631 = vmatpush1.msra.mxu0 0.0
    %632 = vmatprep.subr.mxu0 0.0
    %633 = vmatpush1.msra.mxu0 0.0
    %634 = vmatprep.subr.mxu0 0.0
    %635 = vmatpush1.msra.mxu0 0.0
    %636 = vmatprep.subr.mxu0 0.0
    %637 = vmatpush1.msra.mxu0 0.0
    %638 = vmatprep.subr.mxu0 0.0
    %639 = vmatpush1.msra.mxu0 0.0
    %640 = vmatprep.subr.mxu0 0.0
    %641 = vmatpush1.msra.mxu0 0.0
    %642 = vmatprep.subr.mxu0 0.0
    %643 = vmatpush1.msra.mxu0 0.0
    %644 = vmatprep.subr.mxu0 0.0
    %645 = vmatpush1.msra.mxu0 0.0
    %646 = vmatprep.subr.mxu0 0.0
    %647 = vmatpush1.msra.mxu0 0.0
    %648 = vmatprep.subr.mxu0 0.0
    %649 = vmatpush1.msra.mxu0 0.0
    %650 = vmatprep.subr.mxu0 0.0
    %651 = vmatpush1.msra.mxu0 0.0
    %652 = vmatprep.subr.mxu0 0.0
    %653 = vmatpush1.msra.mxu0 0.0
    %654 = vmatprep.mubr.f32.mxu0 0.0
    %655 = vmatmul.mubr.f32.gmra.mrb[0].mxu0 %v199
    %v656 = vpop.f32.mrb[0].mxu0
    %v657 = vadd.f32 %v180, %v656
    %v658 = vpop.f32.mrb[0].mxu0
    %659 = vmatprep.mubr.f32.mxu0 0.0
    %660 = vmatmul.mubr.f32.gmra.mrb[0].mxu0 %v202
    %v661 = vpop.f32.mrb[0].mxu0
    %v662 = vadd.f32 %v185, %v661
    %v663 = vpop.f32.mrb[0].mxu0
    %664 = vmatprep.mubr.f32.mxu0 0.0
    %665 = vmatmul.mubr.f32.gmra.mrb[0].mxu0 %v205
    %v666 = vpop.f32.mrb[0].mxu0
    %v667 = vadd.f32 %v190, %v666
    %v668 = vpop.f32.mrb[0].mxu0
    %669 = vmatprep.mubr.f32.mxu0 0.0
    %670 = vmatmul.mubr.f32.gmra.mrb[0].mxu0 %v208
    %v671 = vpop.f32.mrb[0].mxu0
    %v672 = vadd.f32 %v195, %v671
    %v673 = vpop.f32.mrb[0].mxu0
    %674 = vdwg.mxu0
    %v675 = vmax.f32 %v657, 0.0
    %v676 = vmax.f32 %v662, 0.0
    %v677 = vmax.f32 %v667, 0.0
    %v678 = vmax.f32 %v672, 0.0
    %679 = vmatprep.subr.mxu0 0.0
    %680 = vmatpush1.msra.mxu0 %v675
    %681 = vmatprep.subr.mxu0 0.0
    %682 = vmatpush1.msra.mxu0 %v676
    %683 = vmatprep.subr.mxu0 0.0
    %684 = vmatpush1.msra.mxu0 %v677
    %685 = vmatprep.subr.mxu0 0.0
    %686 = vmatpush1.msra.mxu0 %v678
    %687 = vmatprep.subr.mxu0 0.0
    %688 = vmatpush1.msra.mxu0 0.0
    %689 = vmatprep.subr.mxu0 0.0
    %690 = vmatpush1.msra.mxu0 0.0
    %691 = vmatprep.subr.mxu0 0.0
    %692 = vmatpush1.msra.mxu0 0.0
    %693 = vmatprep.subr.mxu0 0.0
    %694 = vmatpush1.msra.mxu0 0.0
    %695 = vmatprep.subr.mxu0 0.0
    %696 = vmatpush1.msra.mxu0 0.0
    %697 = vmatprep.subr.mxu0 0.0
    %698 = vmatpush1.msra.mxu0 0.0
    %699 = vmatprep.subr.mxu0 0.0
    %700 = vmatpush1.msra.mxu0 0.0
    %701 = vmatprep.subr.mxu0 0.0
    %702 = vmatpush1.msra.mxu0 0.0
    %703 = vmatprep.subr.mxu0 0.0
    %704 = vmatpush1.msra.mxu0 0.0
    %705 = vmatprep.subr.mxu0 0.0
    %706 = vmatpush1.msra.mxu0 0.0
    %707 = vmatprep.subr.mxu0 0.0
    %708 = vmatpush1.msra.mxu0 0.0
    %709 = vmatprep.subr.mxu0 0.0
    %710 = vmatpush1.msra.mxu0 0.0
    %711 = vmatprep.subr.mxu0 0.0
    %712 = vmatpush1.msra.mxu0 0.0
    %713 = vmatprep.subr.mxu0 0.0
    %714 = vmatpush1.msra.mxu0 0.0
    %715 = vmatprep.subr.mxu0 0.0
    %716 = vmatpush1.msra.mxu0 0.0
    %717 = vmatprep.subr.mxu0 0.0
    %718 = vmatpush1.msra.mxu0 0.0
    %719 = vmatprep.subr.mxu0 0.0
    %720 = vmatpush1.msra.mxu0 0.0
    %721 = vmatprep.subr.mxu0 0.0
    %722 = vmatpush1.msra.mxu0 0.0
    %723 = vmatprep.subr.mxu0 0.0
    %724 = vmatpush1.msra.mxu0 0.0
    %725 = vmatprep.subr.mxu0 0.0
    %726 = vmatpush1.msra.mxu0 0.0
    %727 = vmatprep.subr.mxu0 0.0
    %728 = vmatpush1.msra.mxu0 0.0
    %729 = vmatprep.subr.mxu0 0.0
    %730 = vmatpush1.msra.mxu0 0.0
    %731 = vmatprep.subr.mxu0 0.0
    %732 = vmatpush1.msra.mxu0 0.0
    %733 = vmatprep.subr.mxu0 0.0
    %734 = vmatpush1.msra.mxu0 0.0
    %735 = vmatprep.subr.mxu0 0.0
    %736 = vmatpush1.msra.mxu0 0.0
    %737 = vmatprep.subr.mxu0 0.0
    %738 = vmatpush1.msra.mxu0 0.0
    %739 = vmatprep.subr.mxu0 0.0
    %740 = vmatpush1.msra.mxu0 0.0
    %741 = vmatprep.subr.mxu0 0.0
    %742 = vmatpush1.msra.mxu0 0.0
    %743 = vmatprep.mubr.f32.mxu0 0.0
    %744 = vmatmul.mubr.f32.gmra.mrb[0].mxu0 %v320
    %v745 = vpop.f32.mrb[0].mxu0
    %v746 = vadd.f32 %v302, %v745
    %v747 = vpop.f32.mrb[0].mxu0
    %748 = vmatprep.mubr.f32.mxu0 0.0
    %749 = vmatmul.mubr.f32.gmra.mrb[0].mxu0 %v323
    %v750 = vpop.f32.mrb[0].mxu0
    %v751 = vadd.f32 %v307, %v750
    %v752 = vpop.f32.mrb[0].mxu0
    %753 = vmatprep.mubr.f32.mxu0 0.0
    %754 = vmatmul.mubr.f32.gmra.mrb[0].mxu0 %v326
    %v755 = vpop.f32.mrb[0].mxu0
    %v756 = vadd.f32 %v312, %v755
    %v757 = vpop.f32.mrb[0].mxu0
    %758 = vmatprep.mubr.f32.mxu0 0.0
    %759 = vmatmul.mubr.f32.gmra.mrb[0].mxu0 %v329
    %v760 = vpop.f32.mrb[0].mxu0
    %v761 = vadd.f32 %v317, %v760
    %v762 = vpop.f32.mrb[0].mxu0
    %763 = vdwg.mxu0
    %v764 = vld [vmem:[%s7] sm:$0xff]
    %v765 = vld [vmem:[%s8] sm:$0xff]
    %767 = vset.pattern.permute.xlu0 0
    %768 = vperm.xlu0 %767, %v765
    %v769 = vpop.permute.xlu0 %768
    %v772 = vsel %vm197, %v764, 0
    %774 = vmatprep.subr.mxu0 0.0
    %775 = vmatpush1.msra.mxu0 %v746
    %776 = vmatprep.subr.mxu0 0.0
    %777 = vmatpush1.msra.mxu0 %v751
    %778 = vmatprep.subr.mxu0 0.0
    %779 = vmatpush1.msra.mxu0 %v756
    %780 = vmatprep.subr.mxu0 0.0
    %781 = vmatpush1.msra.mxu0 %v761
    %782 = vmatprep.subr.mxu0 0.0
    %783 = vmatpush1.msra.mxu0 0.0
    %784 = vmatprep.subr.mxu0 0.0
    %785 = vmatpush1.msra.mxu0 0.0
    %786 = vmatprep.subr.mxu0 0.0
    %787 = vmatpush1.msra.mxu0 0.0
    %788 = vmatprep.subr.mxu0 0.0
    %789 = vmatpush1.msra.mxu0 0.0
    %790 = vmatprep.subr.mxu0 0.0
    %791 = vmatpush1.msra.mxu0 0.0
    %792 = vmatprep.subr.mxu0 0.0
    %793 = vmatpush1.msra.mxu0 0.0
    %794 = vmatprep.subr.mxu0 0.0
    %795 = vmatpush1.msra.mxu0 0.0
    %796 = vmatprep.subr.mxu0 0.0
    %797 = vmatpush1.msra.mxu0 0.0
    %798 = vmatprep.subr.mxu0 0.0
    %799 = vmatpush1.msra.mxu0 0.0
    %800 = vmatprep.subr.mxu0 0.0
    %801 = vmatpush1.msra.mxu0 0.0
    %802 = vmatprep.subr.mxu0 0.0
    %803 = vmatpush1.msra.mxu0 0.0
    %804 = vmatprep.subr.mxu0 0.0
    %805 = vmatpush1.msra.mxu0 0.0
    %806 = vmatprep.subr.mxu0 0.0
    %807 = vmatpush1.msra.mxu0 0.0
    %808 = vmatprep.subr.mxu0 0.0
    %809 = vmatpush1.msra.mxu0 0.0
    %810 = vmatprep.subr.mxu0 0.0
    %811 = vmatpush1.msra.mxu0 0.0
    %812 = vmatprep.subr.mxu0 0.0
    %813 = vmatpush1.msra.mxu0 0.0
    %814 = vmatprep.subr.mxu0 0.0
    %815 = vmatpush1.msra.mxu0 0.0
    %816 = vmatprep.subr.mxu0 0.0
    %817 = vmatpush1.msra.mxu0 0.0
    %818 = vmatprep.subr.mxu0 0.0
    %819 = vmatpush1.msra.mxu0 0.0
    %820 = vmatprep.subr.mxu0 0.0
    %821 = vmatpush1.msra.mxu0 0.0
    %822 = vmatprep.subr.mxu0 0.0
    %823 = vmatpush1.msra.mxu0 0.0
    %824 = vmatprep.subr.mxu0 0.0
    %825 = vmatpush1.msra.mxu0 0.0
    %826 = vmatprep.subr.mxu0 0.0
    %827 = vmatpush1.msra.mxu0 0.0
    %828 = vmatprep.subr.mxu0 0.0
    %829 = vmatpush1.msra.mxu0 0.0
    %830 = vmatprep.subr.mxu0 0.0
    %831 = vmatpush1.msra.mxu0 0.0
    %832 = vmatprep.subr.mxu0 0.0
    %833 = vmatpush1.msra.mxu0 0.0
    %834 = vmatprep.subr.mxu0 0.0
    %835 = vmatpush1.msra.mxu0 0.0
    %836 = vmatprep.subr.mxu0 0.0
    %837 = vmatpush1.msra.mxu0 0.0
    %838 = vmatprep.mubr.f32.mxu0 0.0
    %839 = vmatmul.mubr.f32.gmra.mrb[0].mxu0 %v772
    %v840 = vpop.f32.mrb[0].mxu0
    %v841 = vadd.f32 %v769, %v840
    %v842 = vpop.f32.mrb[0].mxu0
    %843 = vdwg.mxu0
    %vm844 = vcmask 64512
    %845 = vst.msk [vmem:[#allocation2] sm:$0xff] %vm844, %v841
    // Predicated region
    $region38: #{tpu_custom_call.1} parent=1 // pred_check
      _
    $region39: #{tpu_custom_call.1} parent=1 // pred_check_branch
      %847 = sbr.rel (0) target = $region41
    $region40: #{tpu_custom_call.1} parent=1 // pred_region
      %s849 = ssub.s32 128, 128
      %850 = vsyncadd [#allocation3], %s849
      %s852 = sshll.u32 [#allocation2], 4
      %s853 = int_to_ptr.vmem [resolvable:$true] %s852
      %855 = dma.vmem_to_hbm [thread:$0]  %s853, 128, %s9, [#allocation3]
    $region41: #{tpu_custom_call.1} parent=1 // pred_fallthru
      _
    // Predicated region
    $region42: #{tpu_custom_call.1} parent=1 // pred_check
      _
    $region43: #{tpu_custom_call.1} parent=1 // pred_check_branch
      %857 = sbr.rel (0) target = $region45
    $region44: #{tpu_custom_call.1} parent=1 // pred_region
      %858 = dma.done [#allocation3], 128
    $region45: #{tpu_custom_call.1} parent=1 // pred_fallthru
      _
    %859 = vsyncpa [#allocation3], 1

</llo_original>
